<compile_context>
chip_gen: v6e
topology: v6e:2x2x1
jax: 0.10.0
libtpu: 0.0.40
codegen_flags: <defaults>
</compile_context>

<pallas_src>
import jax
import jax.numpy as jnp
from jax import lax
from jax.experimental import pallas as pl
from jax.experimental.pallas import tpu as pltpu

LANE = 128


def _round_up(x, m):
    return ((x + m - 1) // m) * m


def _vmem_limit_bytes():
    """Per-generation scoped-VMEM budget (~3/4 of physical, capped at 100 MiB)."""
    try:
        cap = getattr(pltpu.get_tpu_info(), "vmem_capacity_bytes", None)
        if cap:
            return int(min(cap * 3 // 4, 100 * 1024 * 1024))
    except Exception:
        pass
    return 32 * 1024 * 1024  # conservative fallback (fits v7x scoped VMEM)


def _plan_tiles(n):
    """Pad N and pick (tm output-row tile, tk neighbor tile)."""
    if n <= 1024:
        n_pad = _round_up(n, LANE)
        tm = LANE if n_pad >= 2 * LANE else n_pad   # >=2 row tiles when possible (megacore)
        tk = n_pad
    else:
        n_pad = _round_up(n, 512)
        tm = 512
        tk = 1024 if n_pad % 1024 == 0 else 512
    return n_pad, tm, tk


# --------------------------------------------------------------------- prep (A -> int8, D^{-1/2})


def _prep_kernel(adj_ref, adj_i8_ref, dinv_ref, acc_ref):
    k = pl.program_id(1)

    @pl.when(k == 0)
    def _init():
        acc_ref[...] = jnp.zeros_like(acc_ref)

    a = adj_ref[...]
    adj_i8_ref[...] = a.astype(jnp.int8)                           # 0/1 -> exact int8 copy
    acc_ref[...] += jnp.sum(a, axis=1, keepdims=True)              # partial row degree

    @pl.when(k == pl.num_programs(1) - 1)
    def _finish():
        # DGL clamps zero degrees to 1 for norm='both'; rsqrt goes to the EUP slot.
        dinv_ref[...] = lax.rsqrt(jnp.maximum(acc_ref[...], 1.0))


def _prep_adjacency(adj_pad, *, tm, tk, vmem_limit):
    n = adj_pad.shape[0]
    return pl.pallas_call(
        _prep_kernel,
        out_shape=(
            jax.ShapeDtypeStruct((n, n), jnp.int8),
            jax.ShapeDtypeStruct((n, 1), jnp.float32),
        ),
        grid_spec=pltpu.PrefetchScalarGridSpec(
            num_scalar_prefetch=0,
            grid=(n // tm, n // tk),
            in_specs=[pl.BlockSpec((tm, tk), lambda i, k: (i, k))],
            out_specs=[
                pl.BlockSpec((tm, tk), lambda i, k: (i, k)),
                pl.BlockSpec((tm, 1), lambda i, k: (i, 0)),
            ],
            scratch_shapes=[pltpu.VMEM((tm, 1), jnp.float32)],
        ),
        compiler_params=pltpu.CompilerParams(
            dimension_semantics=("parallel", "arbitrary"),
            vmem_limit_bytes=vmem_limit,
        ),
    )(adj_pad)


# --------------------------------------------------------------------- layer 1 (+ fused W2 transform)


def _layer1_kernel(adj_ref, xs_ref, w1_ref, b1_ref, w2_ref, dinv_ref, t_ref, acc_ref):
    k = pl.program_id(1)

    @pl.when(k == 0)
    def _init():
        acc_ref[...] = jnp.zeros_like(acc_ref)

    # N^2 aggregation on the MXU: int8 adjacency tile cast to bf16 in-VMEM,
    # source-prescaled bf16 features, f32 accumulation in VMEM scratch.
    acc_ref[...] += jnp.dot(
        adj_ref[...].astype(jnp.bfloat16),
        xs_ref[...],
        preferred_element_type=jnp.float32,
    )

    @pl.when(k == pl.num_programs(1) - 1)
    def _finish():
        d = dinv_ref[...]                                          # dst D^{-1/2}  [tm, 1]
        h = d * acc_ref[...]                                       # [tm, in]
        h = jnp.dot(h.astype(jnp.bfloat16), w1_ref[...],
                    preferred_element_type=jnp.float32)            # [tm, hid_pad]
        h = jnp.maximum(h + b1_ref[...], 0.0)                      # relu
        # TODO(synk): dropout(0.5) is eval-mode identity here.
        h = d * h                                                  # layer-2 source D^{-1/2}
        t = jnp.dot(h.astype(jnp.bfloat16), w2_ref[...],
                    preferred_element_type=jnp.float32)            # [tm, out_pad]
        t_ref[...] = t.astype(t_ref.dtype)                         # written once per row tile


def _layer1(adj_i8, xs, w1p, b1p, w2p, dinv, *, tm, tk, vmem_limit):
    n = adj_i8.shape[0]
    f_in = xs.shape[1]
    hid_pad = w1p.shape[1]
    out_pad = w2p.shape[1]
    return pl.pallas_call(
        _layer1_kernel,
        out_shape=jax.ShapeDtypeStruct((n, out_pad), jnp.bfloat16),
        grid_spec=pltpu.PrefetchScalarGridSpec(
            num_scalar_prefetch=0,
            grid=(n // tm, n // tk),
            in_specs=[
                pl.BlockSpec((tm, tk), lambda i, k: (i, k)),               # int8 adjacency tile
                pl.BlockSpec((tk, f_in), lambda i, k: (k, 0)),             # pre-scaled bf16 features
                pl.BlockSpec((w1p.shape[0], hid_pad), lambda i, k: (0, 0)),  # W1 (resident, bf16)
                pl.BlockSpec((1, hid_pad), lambda i, k: (0, 0)),           # b1 (resident)
                pl.BlockSpec((hid_pad, out_pad), lambda i, k: (0, 0)),     # W2 (resident, bf16)
                pl.BlockSpec((tm, 1), lambda i, k: (i, 0)),                # D^{-1/2}
            ],
            out_specs=pl.BlockSpec((tm, out_pad), lambda i, k: (i, 0)),
            scratch_shapes=[pltpu.VMEM((tm, f_in), jnp.float32)],
        ),
        compiler_params=pltpu.CompilerParams(
            dimension_semantics=("parallel", "arbitrary"),
            vmem_limit_bytes=vmem_limit,
        ),
    )(adj_i8, xs, w1p, b1p, w2p, dinv)


# --------------------------------------------------------------------- layer 2 (aggregation only)


def _layer2_kernel(adj_ref, t_ref, b2_ref, dinv_ref, out_ref, acc_ref):
    k = pl.program_id(1)

    @pl.when(k == 0)
    def _init():
        acc_ref[...] = jnp.zeros_like(acc_ref)

    acc_ref[...] += jnp.dot(
        adj_ref[...].astype(jnp.bfloat16),
        t_ref[...],
        preferred_element_type=jnp.float32,
    )

    @pl.when(k == pl.num_programs(1) - 1)
    def _finish():
        out_ref[...] = (dinv_ref[...] * acc_ref[...] + b2_ref[...]).astype(out_ref.dtype)


def _layer2(adj_i8, t, b2p, dinv, *, tm, tk, vmem_limit):
    n = adj_i8.shape[0]
    out_pad = t.shape[1]
    return pl.pallas_call(
        _layer2_kernel,
        out_shape=jax.ShapeDtypeStruct((n, out_pad), jnp.float32),
        grid_spec=pltpu.PrefetchScalarGridSpec(
            num_scalar_prefetch=0,
            grid=(n // tm, n // tk),
            in_specs=[
                pl.BlockSpec((tm, tk), lambda i, k: (i, k)),           # int8 adjacency tile
                pl.BlockSpec((tk, out_pad), lambda i, k: (k, 0)),      # pre-transformed T (bf16)
                pl.BlockSpec((1, out_pad), lambda i, k: (0, 0)),       # b2 (resident)
                pl.BlockSpec((tm, 1), lambda i, k: (i, 0)),            # D^{-1/2}
            ],
            out_specs=pl.BlockSpec((tm, out_pad), lambda i, k: (i, 0)),
            scratch_shapes=[pltpu.VMEM((tm, out_pad), jnp.float32)],
        ),
        compiler_params=pltpu.CompilerParams(
            dimension_semantics=("parallel", "arbitrary"),
            vmem_limit_bytes=vmem_limit,
        ),
    )(adj_i8, t, b2p, dinv)


# --------------------------------------------------------------------- forward


def gcn_forward(adj, x, w1, b1, w2, b2):
    """2-layer GCN forward (dense adjacency, normalization folded into diagonal scalings)."""
    n = adj.shape[0]
    in_size, hid_size = w1.shape
    out_size = w2.shape[1]
    n_pad, tm, tk = _plan_tiles(n)
    vmem_limit = _vmem_limit_bytes()

    hid_pad = _round_up(hid_size, LANE)
    out_pad = _round_up(out_size, LANE)

    # Zero-pad nodes to a tile multiple: padded nodes have zero adjacency rows/cols
    # (degree clamps to 1), zero features, so they never affect real rows; their
    # output rows are sliced away at the end.
    adj_pad = jnp.pad(adj.astype(jnp.float32), ((0, n_pad - n), (0, n_pad - n)))
    x_pad = jnp.pad(x.astype(jnp.float32), ((0, n_pad - n), (0, 0)))

    # Single fused N^2 pass over the f32 adjacency: int8 copy + D^{-1/2}.
    adj_i8, dinv = _prep_adjacency(adj_pad, tm=tm, tk=tk, vmem_limit=vmem_limit)

    # Source-side normalization applied once (O(N*F)); features stream as bf16.
    xs = (dinv * x_pad).astype(jnp.bfloat16)

    # Lane-dense (128-multiple) padded weights/biases; bf16 weights feed the MXU.
    # Padded channels carry zero weights + zero bias -> exactly zero everywhere.
    w1p = jnp.zeros((in_size, hid_pad), jnp.float32).at[:, :hid_size].set(w1).astype(jnp.bfloat16)
    b1p = jnp.zeros((1, hid_pad), jnp.float32).at[:, :hid_size].set(b1.reshape(1, -1))
    w2p = jnp.zeros((hid_pad, out_pad), jnp.float32).at[:hid_size, :out_size].set(w2).astype(jnp.bfloat16)
    b2p = jnp.zeros((1, out_pad), jnp.float32).at[:, :out_size].set(b2.reshape(1, -1))

    # Layer 1 (aggregate first) + relu + source scaling + fused W2 transform -> T (bf16).
    t = _layer1(adj_i8, xs, w1p, b1p, w2p, dinv, tm=tm, tk=tk, vmem_limit=vmem_limit)

    # Layer 2: pure aggregation of T, dst scaling, bias.
    out_full = _layer2(adj_i8, t, b2p, dinv, tm=tm, tk=tk, vmem_limit=vmem_limit)
    return out_full[:n, :out_size]


# --------------------------------------------------------------------- reference


def gcn_reference(adj, x, w1, b1, w2, b2):
    """Pure-JAX f32 reference of the original semantics."""
    deg = jnp.sum(adj, axis=1, keepdims=True)
    inv_sqrt = lax.rsqrt(jnp.maximum(deg, 1.0))
    a_hat = adj * inv_sqrt * inv_sqrt.T
    h = jnp.maximum(a_hat @ (x @ w1) + b1, 0.0)
    return a_hat @ (h @ w2) + b2


def _xavier_uniform(key, shape):
    fan_in, fan_out = shape
    limit = (6.0 / (fan_in + fan_out)) ** 0.5
    return jax.random.uniform(key, shape, jnp.float32, -limit, limit)


if __name__ == "__main__":
    # Small, deterministic problem: N=16 nodes, in_size=16, hid_size=32, out_size=8.
    N, IN_SIZE, HID_SIZE, OUT_SIZE = 16, 16, 32, 8

    key = jax.random.PRNGKey(0)
    k_adj, k_x, k_w1, k_w2 = jax.random.split(key, 4)

    # Random symmetric (undirected) adjacency without self-loops.
    rand = jax.random.uniform(k_adj, (N, N))
    upper = (rand > 0.6).astype(jnp.float32)
    adj = jnp.triu(upper, k=1)
    adj = adj + adj.T                                           # [N, N]

    x = jax.random.normal(k_x, (N, IN_SIZE), jnp.float32)       # node features [N, Fin]

    # GraphConv parameters (xavier-uniform weights, zero biases), deterministic.
    w1 = _xavier_uniform(k_w1, (IN_SIZE, HID_SIZE))
    b1 = jnp.zeros((1, HID_SIZE), jnp.float32)
    w2 = _xavier_uniform(k_w2, (HID_SIZE, OUT_SIZE))
    b2 = jnp.zeros((1, OUT_SIZE), jnp.float32)

    out = gcn_forward(adj, x, w1, b1, w2, b2)
    out = jax.block_until_ready(out)

    ref = gcn_reference(adj, x, w1, b1, w2, b2)
    assert out.shape == (N, OUT_SIZE)
    # Tolerance reflects bf16 MXU operands (features / weights / intermediate T);
    # the adjacency itself is exact and accumulation is f32.
    assert jnp.allclose(out, ref, atol=5e-2, rtol=5e-2), "mismatch vs reference"

    print("KERNEL_OK")
</pallas_src>

<mosaic_0001>
module attributes {stable_mosaic.version = 11 : i64} {
  func.func @_prep_kernel(%arg0: i32, %arg1: i32, %arg2: memref<128x128xf32, #tpu.memory_space<vmem>>, %arg3: memref<128x128xi8, #tpu.memory_space<vmem>>, %arg4: memref<128x1xf32, #tpu.memory_space<vmem>>, %arg5: memref<128x1xf32, #tpu.memory_space<vmem>>) attributes {dimension_semantics = [#tpu.dimension_semantics<parallel>, #tpu.dimension_semantics<arbitrary>], iteration_bounds = array<i64: 1, 1>, scalar_prefetch = 0 : i64, scratch_operands = 1 : i64, tpu.core_type = #tpu.core_type<tc>, window_params = [{transform_indices = @transform_0, window_bounds = array<i64: 128, 128>}, {transform_indices = @transform_1, window_bounds = array<i64: 128, 128>}, {transform_indices = @transform_2, window_bounds = array<i64: 128, 1>}]} {
    %c0_i32 = arith.constant 0 : i32
    %0 = arith.cmpi eq, %arg1, %c0_i32 : i32
    %1 = arith.extui %0 : i1 to i32
    %c0_i32_0 = arith.constant 0 : i32
    %2 = arith.cmpi ne, %1, %c0_i32_0 : i32
    scf.if %2 {
      %cst_10 = arith.constant 0.000000e+00 : f32
      %14 = vector.broadcast %cst_10 : f32 to vector<128x1xf32>
      %c0_11 = arith.constant 0 : index
      %c0_12 = arith.constant 0 : index
      %15 = vector.load %arg5[%c0_11, %c0_12] : memref<128x1xf32, #tpu.memory_space<vmem>>, vector<128x1xf32>
      tpu.vector_store %arg5[%c0_11, %c0_12], %14 {strides = array<i32>} : memref<128x1xf32, #tpu.memory_space<vmem>>, vector<128x1xf32>,
    } else {
    }
    %c0 = arith.constant 0 : index
    %c0_1 = arith.constant 0 : index
    %3 = vector.load %arg2[%c0, %c0_1] : memref<128x128xf32, #tpu.memory_space<vmem>>, vector<128x128xf32>
    %4 = arith.fptosi %3 : vector<128x128xf32> to vector<128x128xi8>
    %c0_2 = arith.constant 0 : index
    %c0_3 = arith.constant 0 : index
    %5 = vector.load %arg3[%c0_2, %c0_3] : memref<128x128xi8, #tpu.memory_space<vmem>>, vector<128x128xi8>
    tpu.vector_store %arg3[%c0_2, %c0_3], %4 {strides = array<i32>} : memref<128x128xi8, #tpu.memory_space<vmem>>, vector<128x128xi8>,
    %c0_4 = arith.constant 0 : index
    %c0_5 = arith.constant 0 : index
    %6 = vector.load %arg5[%c0_4, %c0_5] : memref<128x1xf32, #tpu.memory_space<vmem>>, vector<128x1xf32>
    %cst = arith.constant dense<0.000000e+00> : vector<128xf32>
    %7 = vector.multi_reduction <add>, %3, %cst [1] : vector<128x128xf32> to vector<128xf32>
    %8 = vector.shape_cast %7 : vector<128xf32> to vector<128x1xf32>
    %9 = arith.addf %6, %8 : vector<128x1xf32>
    %c0_6 = arith.constant 0 : index
    %c0_7 = arith.constant 0 : index
    %10 = vector.load %arg5[%c0_6, %c0_7] : memref<128x1xf32, #tpu.memory_space<vmem>>, vector<128x1xf32>
    tpu.vector_store %arg5[%c0_6, %c0_7], %9 {strides = array<i32>} : memref<128x1xf32, #tpu.memory_space<vmem>>, vector<128x1xf32>,
    %c0_i32_8 = arith.constant 0 : i32
    %11 = arith.cmpi eq, %arg1, %c0_i32_8 : i32
    %12 = arith.extui %11 : i1 to i32
    %c0_i32_9 = arith.constant 0 : i32
    %13 = arith.cmpi ne, %12, %c0_i32_9 : i32
    scf.if %13 {
      %c0_10 = arith.constant 0 : index
      %c0_11 = arith.constant 0 : index
      %14 = vector.load %arg5[%c0_10, %c0_11] : memref<128x1xf32, #tpu.memory_space<vmem>>, vector<128x1xf32>
      %cst_12 = arith.constant 1.000000e+00 : f32
      %15 = vector.broadcast %cst_12 : f32 to vector<128x1xf32>
      %16 = arith.maximumf %14, %15 : vector<128x1xf32>
      %17 = math.rsqrt %16 : vector<128x1xf32>
      %c0_13 = arith.constant 0 : index
      %c0_14 = arith.constant 0 : index
      %18 = vector.load %arg4[%c0_13, %c0_14] : memref<128x1xf32, #tpu.memory_space<vmem>>, vector<128x1xf32>
      tpu.vector_store %arg4[%c0_13, %c0_14], %17 {strides = array<i32>} : memref<128x1xf32, #tpu.memory_space<vmem>>, vector<128x1xf32>,
    } else {
    }
    return
  }
  func.func @transform_0(%arg0: i32, %arg1: i32) -> (i32, i32) {
    %c0_i32 = arith.constant 0 : i32
    return %arg0, %arg1 : i32, i32
  }
  func.func @transform_1(%arg0: i32, %arg1: i32) -> (i32, i32) {
    %c0_i32 = arith.constant 0 : i32
    return %arg0, %arg1 : i32, i32
  }
  func.func @transform_2(%arg0: i32, %arg1: i32) -> (i32, i32) {
    %c0_i32 = arith.constant 0 : i32
    %c0_i32_0 = arith.constant 0 : i32
    return %arg0, %c0_i32 : i32, i32
  }
}

</mosaic_0001>

<llo_original>
// kernel: tpu_custom_call.1
$region0: #{tpu_custom_call.1}
  #allocation0 [shape = 'u32[]', space=smem, size = 0x4, offset = 0x4, fixed_abs, tag = 'smem constant byte address 0x4 - core index']
  #allocation1 [shape = 'u32[144,128]{1,0:T(1,128)}', space=vmem, size = 0x12000, scoped, tag = 'internal scratch']
  #allocation2 [shape = 'f32[128,1]{1,0:T(8,128)}', space=vmem, size = 0x10000, scoped, tag = 'scratch operand']
  %s0 = inlined_call_operand.hbm [shape: f32[128,128], index: 0, kind: input, shape index: {}]
  %s1 = inlined_call_operand.hbm [shape: s8[128,128], index: 1, kind: output, shape index: {0}]
  %s2 = inlined_call_operand.vmem [shape: f32[128,1], index: 2, kind: output, shape index: {1}]
  %3 = xla_tuple %s1, %s2
  %s4 = sld [smem:[#allocation0]]
  $region34: #{tpu_custom_call.1} parent=0
    _
  %s6 = ssub.s32 1, %s4
  %s7 = scalar_select 0, %s6, %s4
  $region1: #{tpu_custom_call.1} parent=0
    #allocation3 [shape = 'u8[65536]{0}', space=vmem, size = 0x10000, scoped, tag = 'input window, operand 0, single buffered']
    #allocation4 [shape = 's32[1]{0}', space=sflag, size = 0x4, scoped, tag = 'scoped memory for tpu_custom_call.1']
    #allocation5 [shape = 's32[1]{0}', space=sflag, size = 0x4, scoped, tag = 'scoped memory for tpu_custom_call.1']
    #allocation6 [shape = 'u8[16384]{0}', space=vmem, size = 0x4000, scoped, tag = 'output window, operand 0, single buffered']
    %8 = vsyncpa [#allocation4], 0
    %9 = vsyncpa [#allocation5], 0
    // Predicated region
    $region2: #{tpu_custom_call.1} parent=1 // pred_check
      _
    $region3: #{tpu_custom_call.1} parent=1 // pred_check_branch
      %11 = sbr.rel (0) target = $region5
    $region4: #{tpu_custom_call.1} parent=1 // pred_region
      %s13 = ssub.s32 2048, 2048
      %14 = vsyncadd [#allocation4], %s13
      %s15 = sshll.u32 [#allocation3], 4
      %s16 = int_to_ptr.vmem [resolvable:$true] %s15
      %21 = dma.hbm_to_vmem [thread:$0]  %s0, 2048, %s16, [#allocation4], 128, 128, 8
    $region5: #{tpu_custom_call.1} parent=1 // pred_fallthru
      _
    // Predicated region
    $region6: #{tpu_custom_call.1} parent=1 // pred_check
      _
    $region7: #{tpu_custom_call.1} parent=1 // pred_check_branch
      %23 = sbr.rel (0) target = $region9
    $region8: #{tpu_custom_call.1} parent=1 // pred_region
      %24 = dma.done [#allocation4], 2048
    $region9: #{tpu_custom_call.1} parent=1 // pred_fallthru
      _
    %p25 = scmp.eq.s32.totalorder 0, 0
    // Predicated region
    $region10: #{tpu_custom_call.1} parent=1 // pred_check
      %p26 = pneg %p25
    $region11: #{tpu_custom_call.1} parent=1 // pred_check_branch
      %28 = sbr.rel (%p26) target = $region13
    $region12: #{tpu_custom_call.1} parent=1 // pred_region
      %vm29 = vcmask 7168
      %30 = vst.msk [vmem:[#allocation2] sm:$0xff] %vm29, 0.0
      %31 = vst.msk [vmem:[#allocation2 + $0x8] sm:$0xff] %vm29, 0.0
      %32 = vst.msk [vmem:[#allocation2 + $0x10] sm:$0xff] %vm29, 0.0
      %33 = vst.msk [vmem:[#allocation2 + $0x18] sm:$0xff] %vm29, 0.0
      %34 = vst.msk [vmem:[#allocation2 + $0x20] sm:$0xff] %vm29, 0.0
      %35 = vst.msk [vmem:[#allocation2 + $0x28] sm:$0xff] %vm29, 0.0
      %36 = vst.msk [vmem:[#allocation2 + $0x30] sm:$0xff] %vm29, 0.0
      %37 = vst.msk [vmem:[#allocation2 + $0x38] sm:$0xff] %vm29, 0.0
      %38 = vst.msk [vmem:[#allocation2 + $0x40] sm:$0xff] %vm29, 0.0
      %39 = vst.msk [vmem:[#allocation2 + $0x48] sm:$0xff] %vm29, 0.0
      %40 = vst.msk [vmem:[#allocation2 + $0x50] sm:$0xff] %vm29, 0.0
      %41 = vst.msk [vmem:[#allocation2 + $0x58] sm:$0xff] %vm29, 0.0
      %42 = vst.msk [vmem:[#allocation2 + $0x60] sm:$0xff] %vm29, 0.0
      %43 = vst.msk [vmem:[#allocation2 + $0x68] sm:$0xff] %vm29, 0.0
      %44 = vst.msk [vmem:[#allocation2 + $0x70] sm:$0xff] %vm29, 0.0
      %45 = vst.msk [vmem:[#allocation2 + $0x78] sm:$0xff] %vm29, 0.0
    $region13: #{tpu_custom_call.1} parent=1 // pred_fallthru
      _
    %v46 = vld [vmem:[#allocation3] sm:$0xff]
    %v47 = vld [vmem:[#allocation3 + $0x8] sm:$0xff]
    %v48 = vld [vmem:[#allocation3 + $0x10] sm:$0xff]
    %v49 = vld [vmem:[#allocation3 + $0x18] sm:$0xff]
    %v50 = vld [vmem:[#allocation3 + $0x20] sm:$0xff]
    %v51 = vld [vmem:[#allocation3 + $0x28] sm:$0xff]
    %v52 = vld [vmem:[#allocation3 + $0x30] sm:$0xff]
    %v53 = vld [vmem:[#allocation3 + $0x38] sm:$0xff]
    %v54 = vld [vmem:[#allocation3 + $0x40] sm:$0xff]
    %v55 = vld [vmem:[#allocation3 + $0x48] sm:$0xff]
    %v56 = vld [vmem:[#allocation3 + $0x50] sm:$0xff]
    %v57 = vld [vmem:[#allocation3 + $0x58] sm:$0xff]
    %v58 = vld [vmem:[#allocation3 + $0x60] sm:$0xff]
    %v59 = vld [vmem:[#allocation3 + $0x68] sm:$0xff]
    %v60 = vld [vmem:[#allocation3 + $0x70] sm:$0xff]
    %v61 = vld [vmem:[#allocation3 + $0x78] sm:$0xff]
    %v62 = vmax.f32 %v46, -128.0
    %v63 = vmax.f32 %v47, -128.0
    %v64 = vmax.f32 %v48, -128.0
    %v65 = vmax.f32 %v49, -128.0
    %v66 = vmax.f32 %v50, -128.0
    %v67 = vmax.f32 %v51, -128.0
    %v68 = vmax.f32 %v52, -128.0
    %v69 = vmax.f32 %v53, -128.0
    %v70 = vmax.f32 %v54, -128.0
    %v71 = vmax.f32 %v55, -128.0
    %v72 = vmax.f32 %v56, -128.0
    %v73 = vmax.f32 %v57, -128.0
    %v74 = vmax.f32 %v58, -128.0
    %v75 = vmax.f32 %v59, -128.0
    %v76 = vmax.f32 %v60, -128.0
    %v77 = vmax.f32 %v61, -128.0
    %v78 = vmin.f32 %v62, 127.0
    %v79 = vmin.f32 %v63, 127.0
    %v80 = vmin.f32 %v64, 127.0
    %v81 = vmin.f32 %v65, 127.0
    %v82 = vmin.f32 %v66, 127.0
    %v83 = vmin.f32 %v67, 127.0
    %v84 = vmin.f32 %v68, 127.0
    %v85 = vmin.f32 %v69, 127.0
    %v86 = vmin.f32 %v70, 127.0
    %v87 = vmin.f32 %v71, 127.0
    %v88 = vmin.f32 %v72, 127.0
    %v89 = vmin.f32 %v73, 127.0
    %v90 = vmin.f32 %v74, 127.0
    %v91 = vmin.f32 %v75, 127.0
    %v92 = vmin.f32 %v76, 127.0
    %v93 = vmin.f32 %v77, 127.0
    %v94 = vcvt.f32.s32.to.zero.pseudo %v78
    %v95 = vcvt.f32.s32.to.zero.pseudo %v79
    %v96 = vcvt.f32.s32.to.zero.pseudo %v80
    %v97 = vcvt.f32.s32.to.zero.pseudo %v81
    %v98 = vcvt.f32.s32.to.zero.pseudo %v82
    %v99 = vcvt.f32.s32.to.zero.pseudo %v83
    %v100 = vcvt.f32.s32.to.zero.pseudo %v84
    %v101 = vcvt.f32.s32.to.zero.pseudo %v85
    %v102 = vcvt.f32.s32.to.zero.pseudo %v86
    %v103 = vcvt.f32.s32.to.zero.pseudo %v87
    %v104 = vcvt.f32.s32.to.zero.pseudo %v88
    %v105 = vcvt.f32.s32.to.zero.pseudo %v89
    %v106 = vcvt.f32.s32.to.zero.pseudo %v90
    %v107 = vcvt.f32.s32.to.zero.pseudo %v91
    %v108 = vcvt.f32.s32.to.zero.pseudo %v92
    %v109 = vcvt.f32.s32.to.zero.pseudo %v93
    %v110 = vpack.c.b16 %v95, %v94
    %v111 = vpack.c.b16 %v97, %v96
    %v112 = vpack.c.b8 %v111, %v110
    %v113 = vpack.c.b16 %v99, %v98
    %v114 = vpack.c.b16 %v101, %v100
    %v115 = vpack.c.b8 %v114, %v113
    %v116 = vpack.c.b16 %v103, %v102
    %v117 = vpack.c.b16 %v105, %v104
    %v118 = vpack.c.b8 %v117, %v116
    %v119 = vpack.c.b16 %v107, %v106
    %v120 = vpack.c.b16 %v109, %v108
    %v121 = vpack.c.b8 %v120, %v119
    %122 = vst [vmem:[#allocation6] sm:$0xff] %v112
    %123 = vst [vmem:[#allocation6 + $0x8] sm:$0xff] %v115
    %124 = vst [vmem:[#allocation6 + $0x10] sm:$0xff] %v118
    %125 = vst [vmem:[#allocation6 + $0x18] sm:$0xff] %v121
    %v126 = vld [vmem:[#allocation2] sm:$0xff]
    %v127 = vld [vmem:[#allocation2 + $0x8] sm:$0xff]
    %v128 = vld [vmem:[#allocation2 + $0x10] sm:$0xff]
    %v129 = vld [vmem:[#allocation2 + $0x18] sm:$0xff]
    %v130 = vld [vmem:[#allocation2 + $0x20] sm:$0xff]
    %v131 = vld [vmem:[#allocation2 + $0x28] sm:$0xff]
    %v132 = vld [vmem:[#allocation2 + $0x30] sm:$0xff]
    %v133 = vld [vmem:[#allocation2 + $0x38] sm:$0xff]
    %v134 = vld [vmem:[#allocation2 + $0x40] sm:$0xff]
    %v135 = vld [vmem:[#allocation2 + $0x48] sm:$0xff]
    %v136 = vld [vmem:[#allocation2 + $0x50] sm:$0xff]
    %v137 = vld [vmem:[#allocation2 + $0x58] sm:$0xff]
    %v138 = vld [vmem:[#allocation2 + $0x60] sm:$0xff]
    %v139 = vld [vmem:[#allocation2 + $0x68] sm:$0xff]
    %v140 = vld [vmem:[#allocation2 + $0x70] sm:$0xff]
    %v141 = vld [vmem:[#allocation2 + $0x78] sm:$0xff]
    %142 = vadd.xlane.f32.xlu0 %v46
    %v143 = vpop.xlane.xlu0 %142
    %144 = vadd.xlane.f32.xlu0 %v47
    %v145 = vpop.xlane.xlu0 %144
    %146 = vadd.xlane.f32.xlu0 %v48
    %v147 = vpop.xlane.xlu0 %146
    %148 = vadd.xlane.f32.xlu0 %v49
    %v149 = vpop.xlane.xlu0 %148
    %150 = vadd.xlane.f32.xlu0 %v50
    %v151 = vpop.xlane.xlu0 %150
    %152 = vadd.xlane.f32.xlu0 %v51
    %v153 = vpop.xlane.xlu0 %152
    %154 = vadd.xlane.f32.xlu0 %v52
    %v155 = vpop.xlane.xlu0 %154
    %156 = vadd.xlane.f32.xlu0 %v53
    %v157 = vpop.xlane.xlu0 %156
    %158 = vadd.xlane.f32.xlu0 %v54
    %v159 = vpop.xlane.xlu0 %158
    %160 = vadd.xlane.f32.xlu0 %v55
    %v161 = vpop.xlane.xlu0 %160
    %162 = vadd.xlane.f32.xlu0 %v56
    %v163 = vpop.xlane.xlu0 %162
    %164 = vadd.xlane.f32.xlu0 %v57
    %v165 = vpop.xlane.xlu0 %164
    %166 = vadd.xlane.f32.xlu0 %v58
    %v167 = vpop.xlane.xlu0 %166
    %168 = vadd.xlane.f32.xlu0 %v59
    %v169 = vpop.xlane.xlu0 %168
    %170 = vadd.xlane.f32.xlu0 %v60
    %v171 = vpop.xlane.xlu0 %170
    %172 = vadd.xlane.f32.xlu0 %v61
    %v173 = vpop.xlane.xlu0 %172
    %v174 = vadd.f32 %v126, %v143
    %v175 = vadd.f32 %v127, %v145
    %v176 = vadd.f32 %v128, %v147
    %v177 = vadd.f32 %v129, %v149
    %v178 = vadd.f32 %v130, %v151
    %v179 = vadd.f32 %v131, %v153
    %v180 = vadd.f32 %v132, %v155
    %v181 = vadd.f32 %v133, %v157
    %v182 = vadd.f32 %v134, %v159
    %v183 = vadd.f32 %v135, %v161
    %v184 = vadd.f32 %v136, %v163
    %v185 = vadd.f32 %v137, %v165
    %v186 = vadd.f32 %v138, %v167
    %v187 = vadd.f32 %v139, %v169
    %v188 = vadd.f32 %v140, %v171
    %v189 = vadd.f32 %v141, %v173
    %vm190 = vcmask 7168
    %191 = vst.msk [vmem:[#allocation2] sm:$0xff] %vm190, %v174
    %192 = vst.msk [vmem:[#allocation2 + $0x8] sm:$0xff] %vm190, %v175
    %193 = vst.msk [vmem:[#allocation2 + $0x10] sm:$0xff] %vm190, %v176
    %194 = vst.msk [vmem:[#allocation2 + $0x18] sm:$0xff] %vm190, %v177
    %195 = vst.msk [vmem:[#allocation2 + $0x20] sm:$0xff] %vm190, %v178
    %196 = vst.msk [vmem:[#allocation2 + $0x28] sm:$0xff] %vm190, %v179
    %197 = vst.msk [vmem:[#allocation2 + $0x30] sm:$0xff] %vm190, %v180
    %198 = vst.msk [vmem:[#allocation2 + $0x38] sm:$0xff] %vm190, %v181
    %199 = vst.msk [vmem:[#allocation2 + $0x40] sm:$0xff] %vm190, %v182
    %200 = vst.msk [vmem:[#allocation2 + $0x48] sm:$0xff] %vm190, %v183
    %201 = vst.msk [vmem:[#allocation2 + $0x50] sm:$0xff] %vm190, %v184
    %202 = vst.msk [vmem:[#allocation2 + $0x58] sm:$0xff] %vm190, %v185
    %203 = vst.msk [vmem:[#allocation2 + $0x60] sm:$0xff] %vm190, %v186
    %204 = vst.msk [vmem:[#allocation2 + $0x68] sm:$0xff] %vm190, %v187
    %205 = vst.msk [vmem:[#allocation2 + $0x70] sm:$0xff] %vm190, %v188
    %206 = vst.msk [vmem:[#allocation2 + $0x78] sm:$0xff] %vm190, %v189
    // Predicated region
    $region14: #{tpu_custom_call.1} parent=1 // pred_check
      %p207 = pneg %p25
    $region15: #{tpu_custom_call.1} parent=1 // pred_check_branch
      %209 = sbr.rel (%p207) target = $region17
    $region16: #{tpu_custom_call.1} parent=1 // pred_region
      %v210 = vld [vmem:[#allocation2] sm:$0xff]
      %v211 = vld [vmem:[#allocation2 + $0x8] sm:$0xff]
      %v212 = vld [vmem:[#allocation2 + $0x10] sm:$0xff]
      %v213 = vld [vmem:[#allocation2 + $0x18] sm:$0xff]
      %v214 = vld [vmem:[#allocation2 + $0x20] sm:$0xff]
      %v215 = vld [vmem:[#allocation2 + $0x28] sm:$0xff]
      %v216 = vld [vmem:[#allocation2 + $0x30] sm:$0xff]
      %v217 = vld [vmem:[#allocation2 + $0x38] sm:$0xff]
      %v218 = vld [vmem:[#allocation2 + $0x40] sm:$0xff]
      %v219 = vld [vmem:[#allocation2 + $0x48] sm:$0xff]
      %v220 = vld [vmem:[#allocation2 + $0x50] sm:$0xff]
      %v221 = vld [vmem:[#allocation2 + $0x58] sm:$0xff]
      %v222 = vld [vmem:[#allocation2 + $0x60] sm:$0xff]
      %v223 = vld [vmem:[#allocation2 + $0x68] sm:$0xff]
      %v224 = vld [vmem:[#allocation2 + $0x70] sm:$0xff]
      %v225 = vld [vmem:[#allocation2 + $0x78] sm:$0xff]
      %v226 = vmax.f32 %v210, 1.0
      %v227 = vmax.f32 %v211, 1.0
      %v228 = vmax.f32 %v212, 1.0
      %v229 = vmax.f32 %v213, 1.0
      %v230 = vmax.f32 %v214, 1.0
      %v231 = vmax.f32 %v215, 1.0
      %v232 = vmax.f32 %v216, 1.0
      %v233 = vmax.f32 %v217, 1.0
      %v234 = vmax.f32 %v218, 1.0
      %v235 = vmax.f32 %v219, 1.0
      %v236 = vmax.f32 %v220, 1.0
      %v237 = vmax.f32 %v221, 1.0
      %v238 = vmax.f32 %v222, 1.0
      %v239 = vmax.f32 %v223, 1.0
      %v240 = vmax.f32 %v224, 1.0
      %v241 = vmax.f32 %v225, 1.0
      %v242 = vrsqrt.pop %v226
      %v243 = vrsqrt.pop %v227
      %v244 = vrsqrt.pop %v228
      %v245 = vrsqrt.pop %v229
      %v246 = vrsqrt.pop %v230
      %v247 = vrsqrt.pop %v231
      %v248 = vrsqrt.pop %v232
      %v249 = vrsqrt.pop %v233
      %v250 = vrsqrt.pop %v234
      %v251 = vrsqrt.pop %v235
      %v252 = vrsqrt.pop %v236
      %v253 = vrsqrt.pop %v237
      %v254 = vrsqrt.pop %v238
      %v255 = vrsqrt.pop %v239
      %v256 = vrsqrt.pop %v240
      %v257 = vrsqrt.pop %v241
      %258 = vst.msk [vmem:[%s2] sm:$0xff] %vm190, %v242
      %259 = vst.msk [vmem:[%s2 + $0x8] sm:$0xff] %vm190, %v243
      %260 = vst.msk [vmem:[%s2 + $0x10] sm:$0xff] %vm190, %v244
      %261 = vst.msk [vmem:[%s2 + $0x18] sm:$0xff] %vm190, %v245
      %262 = vst.msk [vmem:[%s2 + $0x20] sm:$0xff] %vm190, %v246
      %263 = vst.msk [vmem:[%s2 + $0x28] sm:$0xff] %vm190, %v247
      %264 = vst.msk [vmem:[%s2 + $0x30] sm:$0xff] %vm190, %v248
      %265 = vst.msk [vmem:[%s2 + $0x38] sm:$0xff] %vm190, %v249
      %266 = vst.msk [vmem:[%s2 + $0x40] sm:$0xff] %vm190, %v250
      %267 = vst.msk [vmem:[%s2 + $0x48] sm:$0xff] %vm190, %v251
      %268 = vst.msk [vmem:[%s2 + $0x50] sm:$0xff] %vm190, %v252
      %269 = vst.msk [vmem:[%s2 + $0x58] sm:$0xff] %vm190, %v253
      %270 = vst.msk [vmem:[%s2 + $0x60] sm:$0xff] %vm190, %v254
      %271 = vst.msk [vmem:[%s2 + $0x68] sm:$0xff] %vm190, %v255
      %272 = vst.msk [vmem:[%s2 + $0x70] sm:$0xff] %vm190, %v256
      %273 = vst.msk [vmem:[%s2 + $0x78] sm:$0xff] %vm190, %v257
    $region17: #{tpu_custom_call.1} parent=1 // pred_fallthru
      _
    // Predicated region
    $region18: #{tpu_custom_call.1} parent=1 // pred_check
      _
    $region19: #{tpu_custom_call.1} parent=1 // pred_check_branch
      %275 = sbr.rel (0) target = $region21
    $region20: #{tpu_custom_call.1} parent=1 // pred_region
      %s277 = ssub.s32 512, 512
      %278 = vsyncadd [#allocation5], %s277
      %s279 = sshll.u32 [#allocation6], 4
      %s280 = int_to_ptr.vmem [resolvable:$true] %s279
      %285 = dma.vmem_to_hbm [thread:$0]  %s280, 512, %s1, [#allocation5], 128, 128, 8
    $region21: #{tpu_custom_call.1} parent=1 // pred_fallthru
      _
    // Predicated region
    $region22: #{tpu_custom_call.1} parent=1 // pred_check
      _
    $region23: #{tpu_custom_call.1} parent=1 // pred_check_branch
      %287 = sbr.rel (0) target = $region25
    $region24: #{tpu_custom_call.1} parent=1 // pred_region
      _
    $region25: #{tpu_custom_call.1} parent=1 // pred_fallthru
      _
    // Predicated region
    $region26: #{tpu_custom_call.1} parent=1 // pred_check
      _
    $region27: #{tpu_custom_call.1} parent=1 // pred_check_branch
      %289 = sbr.rel (0) target = $region29
    $region28: #{tpu_custom_call.1} parent=1 // pred_region
      %290 = dma.done [#allocation5], 512
    $region29: #{tpu_custom_call.1} parent=1 // pred_fallthru
      _
    // Predicated region
    $region30: #{tpu_custom_call.1} parent=1 // pred_check
      _
    $region31: #{tpu_custom_call.1} parent=1 // pred_check_branch
      %292 = sbr.rel (0) target = $region33
    $region32: #{tpu_custom_call.1} parent=1 // pred_region
      _
    $region33: #{tpu_custom_call.1} parent=1 // pred_fallthru
      _
    %293 = vsyncpa [#allocation4], 1
    %294 = vsyncpa [#allocation5], 1

</llo_original>
